<compile_context>
chip_gen: v6e
topology: v6e:2x2x1
jax: 0.10.0
libtpu: 0.0.40
codegen_flags: <defaults>
</compile_context>

<pallas_src>
import functools
import math

import jax
import jax.numpy as jnp
from jax.experimental import pallas as pl
from jax.experimental.pallas import tpu as pltpu

_SENTINEL = 1e30  # softplus(-1e30) == 0.0 exactly in f32


def _calibration_loss_kernel(t_ref, nt_ref, out_ref, acc_t, acc_n, *,
                             t_rows, n_rows, t_blocks, total_steps,
                             alpha, coef_t, coef_n):
    """One grid step of the streamed reduction.

    Global step g = slot * steps_per_slot + j:
      g in [0, t_blocks)              -> consume one target block
      g in [t_blocks, total_steps)    -> consume one non-target block
      g >= total_steps                -> padded step (no-op)
    j == steps_per_slot - 1           -> write this slot's scaled partial.
    """
    c = pl.program_id(0)
    j = pl.program_id(1)
    steps_per_slot = pl.num_programs(1)
    g = c * steps_per_slot + j

    @pl.when(j == 0)
    def _init():
        acc_t[...] = jnp.zeros_like(acc_t)
        acc_n[...] = jnp.zeros_like(acc_n)

    def softplus_folded(x, rows):
        # Numerically stable softplus(x) = max(x,0) + log1p(exp(-|x|)).
        # Sentinel-padded elements contribute exactly 0 (no mask needed).
        sp = jnp.maximum(x, 0.0) + jnp.log1p(jnp.exp(-jnp.abs(x)))
        # Fold (rows,128) -> (8,128) with element-wise vreg adds (VPU only);
        # the cross-lane reduction is deferred to the wrapper.
        return sp.reshape(rows // 8, 8, 128).sum(axis=0)

    @pl.when(g < t_blocks)
    def _target():
        x = (-alpha) - t_ref[...]           # = -(llr + alpha), 1 VPU op/elem
        acc_t[...] += softplus_folded(x, t_rows)

    @pl.when(jnp.logical_and(g >= t_blocks, g < total_steps))
    def _nontarget():
        x = nt_ref[...] + alpha             # 1 VPU op/elem
        acc_n[...] += softplus_folded(x, n_rows)

    @pl.when(j == steps_per_slot - 1)
    def _finalize():
        out_ref[0, :, :] = coef_t * acc_t[...] + coef_n * acc_n[...]


def _prep(x, pad_value, cap_rows, block_rows=None):
    """Sentinel-pad a 1-D score vector and reshape it to (nb*block_rows, 128)."""
    n = int(x.shape[0])
    rows_needed = int(pl.cdiv(n, 128))
    if block_rows is None:
        nb = int(pl.cdiv(rows_needed, cap_rows))
        block_rows = max(8, ((int(pl.cdiv(rows_needed, nb)) + 7) // 8) * 8)
    block_rows = int(block_rows)
    assert block_rows % 8 == 0
    nb = int(pl.cdiv(rows_needed, block_rows))
    total_rows = nb * block_rows
    pad = total_rows * 128 - n
    if pad:
        x = jnp.pad(x, (0, pad), constant_values=pad_value)
    return x.reshape(total_rows, 128), block_rows, nb


def calibration_loss(target_llrs, nontarget_llrs, ptar=0.01, block_rows=None,
                     max_block_rows=4096, num_slots=2):
    """Pallas calibration loss. Accepts 1-D LLR vectors of any length >= 1."""
    t = jnp.asarray(target_llrs, jnp.float32).reshape(-1)
    nt = jnp.asarray(nontarget_llrs, jnp.float32).reshape(-1)
    n_target = int(t.shape[0])
    n_nontarget = int(nt.shape[0])
    assert n_target > 0 and n_nontarget > 0

    # Target pads with +SENTINEL (sign = -1 in kernel), non-target with -SENTINEL.
    t2d, t_rows, t_blocks = _prep(t, _SENTINEL, max_block_rows, block_rows)
    nt2d, n_rows, n_blocks = _prep(nt, -_SENTINEL, max_block_rows, block_rows)

    total_steps = t_blocks + n_blocks
    num_slots = int(max(1, min(num_slots, total_steps)))
    steps_per_slot = int(pl.cdiv(total_steps, num_slots))

    alpha = float(math.log(ptar / (1.0 - ptar)))
    coef_t = float(ptar / n_target)
    coef_n = float((1.0 - ptar) / n_nontarget)

    kernel = functools.partial(
        _calibration_loss_kernel,
        t_rows=t_rows, n_rows=n_rows, t_blocks=t_blocks,
        total_steps=total_steps, alpha=alpha, coef_t=coef_t, coef_n=coef_n)

    # Clamped index maps: during the other phase (or padded steps) an input's
    # block index does not change, so it is not re-DMA'd.
    def t_index_map(c, j, _spc=steps_per_slot, _tb=t_blocks):
        g = c * _spc + j
        return (jnp.minimum(g, _tb - 1), 0)

    def nt_index_map(c, j, _spc=steps_per_slot, _tb=t_blocks, _nb=n_blocks):
        g = c * _spc + j
        return (jnp.clip(g - _tb, 0, _nb - 1), 0)

    partials = pl.pallas_call(
        kernel,
        out_shape=jax.ShapeDtypeStruct((num_slots, 8, 128), jnp.float32),
        grid_spec=pltpu.PrefetchScalarGridSpec(
            num_scalar_prefetch=0,
            grid=(num_slots, steps_per_slot),
            in_specs=[
                pl.BlockSpec((t_rows, 128), t_index_map),
                pl.BlockSpec((n_rows, 128), nt_index_map),
            ],
            out_specs=pl.BlockSpec((1, 8, 128), lambda c, j: (c, 0, 0)),
            scratch_shapes=[
                pltpu.VMEM((8, 128), jnp.float32),   # target partial sums
                pltpu.VMEM((8, 128), jnp.float32),   # non-target partial sums
            ],
        ),
        compiler_params=pltpu.CompilerParams(
            dimension_semantics=("parallel", "arbitrary")),
    )(t2d, nt2d)

    # Tiny cross-lane + cross-slot reduction done outside the kernel.
    return jnp.sum(partials)


def _reference_loss(target_llrs, nontarget_llrs, ptar=0.01):
    """Pure-JAX reference matching the PyTorch forward exactly."""
    alpha = math.log(ptar / (1.0 - ptar))

    def nls(x):
        return jnp.log1p(jnp.exp(-x))

    return (ptar * jnp.mean(nls(target_llrs + alpha))
            + (1.0 - ptar) * jnp.mean(nls(-(nontarget_llrs + alpha))))


if __name__ == "__main__":
    key = jax.random.PRNGKey(0)
    k1, k2, k3, k4 = jax.random.split(key, 4)

    # Test 1: small, non-multiples of 128 (exercises sentinel padding).
    target_llrs = jax.random.normal(k1, (300,), jnp.float32) * 2.0 + 3.0
    nontarget_llrs = jax.random.normal(k2, (500,), jnp.float32) * 2.0 - 3.0
    loss = jax.block_until_ready(calibration_loss(target_llrs, nontarget_llrs))
    ref = _reference_loss(target_llrs, nontarget_llrs)
    assert jnp.allclose(loss, ref, rtol=1e-5, atol=1e-6), (loss, ref)

    # Test 2: tiny blocks so both phases stream many blocks across both slots
    # (multi-block target AND non-target, clamped index maps, ragged tails).
    t2 = jax.random.normal(k3, (2000,), jnp.float32) * 2.0 + 3.0
    n2 = jax.random.normal(k4, (9000,), jnp.float32) * 2.0 - 3.0
    loss2 = jax.block_until_ready(calibration_loss(t2, n2, block_rows=8))
    ref2 = _reference_loss(t2, n2)
    assert jnp.allclose(loss2, ref2, rtol=1e-5, atol=1e-6), (loss2, ref2)

    print("KERNEL_OK")
</pallas_src>

<mosaic_0001>
module attributes {stable_mosaic.version = 11 : i64} {
  func.func @_calibration_loss_kernel(%arg0: i32, %arg1: i32, %arg2: memref<8x128xf32, #tpu.memory_space<vmem>>, %arg3: memref<8x128xf32, #tpu.memory_space<vmem>>, %arg4: memref<1x8x128xf32, #tpu.memory_space<vmem>>, %arg5: memref<8x128xf32, #tpu.memory_space<vmem>>, %arg6: memref<8x128xf32, #tpu.memory_space<vmem>>) attributes {dimension_semantics = [#tpu.dimension_semantics<parallel>, #tpu.dimension_semantics<arbitrary>], iteration_bounds = array<i64: 2, 1>, scalar_prefetch = 0 : i64, scratch_operands = 2 : i64, tpu.core_type = #tpu.core_type<tc>, window_params = [{transform_indices = @transform_0, window_bounds = array<i64: 8, 128>}, {transform_indices = @transform_1, window_bounds = array<i64: 8, 128>}, {transform_indices = @transform_2, window_bounds = array<i64: 1, 8, 128>}]} {
    %c1_i32 = arith.constant 1 : i32
    %0 = arith.muli %arg0, %c1_i32 : i32
    %1 = arith.addi %0, %arg1 : i32
    %c0_i32 = arith.constant 0 : i32
    %2 = arith.cmpi eq, %arg1, %c0_i32 : i32
    %3 = arith.extui %2 : i1 to i32
    %c0_i32_0 = arith.constant 0 : i32
    %4 = arith.cmpi ne, %3, %c0_i32_0 : i32
    scf.if %4 {
      %cst = arith.constant 0.000000e+00 : f32
      %16 = vector.broadcast %cst : f32 to vector<8x128xf32>
      %c0 = arith.constant 0 : index
      %c0_7 = arith.constant 0 : index
      %17 = vector.load %arg5[%c0, %c0_7] : memref<8x128xf32, #tpu.memory_space<vmem>>, vector<8x128xf32>
      tpu.vector_store %arg5[%c0, %c0_7], %16 {strides = array<i32>} : memref<8x128xf32, #tpu.memory_space<vmem>>, vector<8x128xf32>,
      %cst_8 = arith.constant 0.000000e+00 : f32
      %18 = vector.broadcast %cst_8 : f32 to vector<8x128xf32>
      %c0_9 = arith.constant 0 : index
      %c0_10 = arith.constant 0 : index
      %19 = vector.load %arg6[%c0_9, %c0_10] : memref<8x128xf32, #tpu.memory_space<vmem>>, vector<8x128xf32>
      tpu.vector_store %arg6[%c0_9, %c0_10], %18 {strides = array<i32>} : memref<8x128xf32, #tpu.memory_space<vmem>>, vector<8x128xf32>,
    } else {
    }
    %c1_i32_1 = arith.constant 1 : i32
    %5 = arith.cmpi slt, %1, %c1_i32_1 : i32
    %6 = arith.extui %5 : i1 to i32
    %c0_i32_2 = arith.constant 0 : i32
    %7 = arith.cmpi ne, %6, %c0_i32_2 : i32
    scf.if %7 {
      %c0 = arith.constant 0 : index
      %c0_7 = arith.constant 0 : index
      %16 = vector.load %arg2[%c0, %c0_7] : memref<8x128xf32, #tpu.memory_space<vmem>>, vector<8x128xf32>
      %cst = arith.constant 4.595120e+00 : f32
      %17 = vector.broadcast %cst : f32 to vector<8x128xf32>
      %18 = arith.subf %17, %16 : vector<8x128xf32>
      %c0_8 = arith.constant 0 : index
      %c0_9 = arith.constant 0 : index
      %19 = vector.load %arg5[%c0_8, %c0_9] : memref<8x128xf32, #tpu.memory_space<vmem>>, vector<8x128xf32>
      %cst_10 = arith.constant 0.000000e+00 : f32
      %20 = vector.broadcast %cst_10 : f32 to vector<8x128xf32>
      %21 = arith.maximumf %18, %20 : vector<8x128xf32>
      %22 = math.absf %18 : vector<8x128xf32>
      %cst_11 = arith.constant 0.000000e+00 : f32
      %23 = vector.broadcast %cst_11 : f32 to vector<8x128xf32>
      %24 = arith.subf %23, %22 : vector<8x128xf32>
      %25 = math.exp %24 : vector<8x128xf32>
      %26 = math.log1p %25 : vector<8x128xf32>
      %27 = arith.addf %21, %26 : vector<8x128xf32>
      %28 = vector.shape_cast %27 : vector<8x128xf32> to vector<1x8x128xf32>
      %cst_12 = arith.constant dense<0.000000e+00> : vector<8x128xf32>
      %29 = vector.multi_reduction <add>, %28, %cst_12 [0] : vector<1x8x128xf32> to vector<8x128xf32>
      %30 = arith.addf %19, %29 : vector<8x128xf32>
      %c0_13 = arith.constant 0 : index
      %c0_14 = arith.constant 0 : index
      %31 = vector.load %arg5[%c0_13, %c0_14] : memref<8x128xf32, #tpu.memory_space<vmem>>, vector<8x128xf32>
      tpu.vector_store %arg5[%c0_13, %c0_14], %30 {strides = array<i32>} : memref<8x128xf32, #tpu.memory_space<vmem>>, vector<8x128xf32>,
    } else {
    }
    %c1_i32_3 = arith.constant 1 : i32
    %8 = arith.cmpi sge, %1, %c1_i32_3 : i32
    %c2_i32 = arith.constant 2 : i32
    %9 = arith.cmpi slt, %1, %c2_i32 : i32
    %10 = arith.andi %8, %9 : i1
    %11 = arith.extui %10 : i1 to i32
    %c0_i32_4 = arith.constant 0 : i32
    %12 = arith.cmpi ne, %11, %c0_i32_4 : i32
    scf.if %12 {
      %c0 = arith.constant 0 : index
      %c0_7 = arith.constant 0 : index
      %16 = vector.load %arg3[%c0, %c0_7] : memref<8x128xf32, #tpu.memory_space<vmem>>, vector<8x128xf32>
      %cst = arith.constant -4.595120e+00 : f32
      %17 = vector.broadcast %cst : f32 to vector<8x128xf32>
      %18 = arith.addf %16, %17 : vector<8x128xf32>
      %c0_8 = arith.constant 0 : index
      %c0_9 = arith.constant 0 : index
      %19 = vector.load %arg6[%c0_8, %c0_9] : memref<8x128xf32, #tpu.memory_space<vmem>>, vector<8x128xf32>
      %cst_10 = arith.constant 0.000000e+00 : f32
      %20 = vector.broadcast %cst_10 : f32 to vector<8x128xf32>
      %21 = arith.maximumf %18, %20 : vector<8x128xf32>
      %22 = math.absf %18 : vector<8x128xf32>
      %cst_11 = arith.constant 0.000000e+00 : f32
      %23 = vector.broadcast %cst_11 : f32 to vector<8x128xf32>
      %24 = arith.subf %23, %22 : vector<8x128xf32>
      %25 = math.exp %24 : vector<8x128xf32>
      %26 = math.log1p %25 : vector<8x128xf32>
      %27 = arith.addf %21, %26 : vector<8x128xf32>
      %28 = vector.shape_cast %27 : vector<8x128xf32> to vector<1x8x128xf32>
      %cst_12 = arith.constant dense<0.000000e+00> : vector<8x128xf32>
      %29 = vector.multi_reduction <add>, %28, %cst_12 [0] : vector<1x8x128xf32> to vector<8x128xf32>
      %30 = arith.addf %19, %29 : vector<8x128xf32>
      %c0_13 = arith.constant 0 : index
      %c0_14 = arith.constant 0 : index
      %31 = vector.load %arg6[%c0_13, %c0_14] : memref<8x128xf32, #tpu.memory_space<vmem>>, vector<8x128xf32>
      tpu.vector_store %arg6[%c0_13, %c0_14], %30 {strides = array<i32>} : memref<8x128xf32, #tpu.memory_space<vmem>>, vector<8x128xf32>,
    } else {
    }
    %c0_i32_5 = arith.constant 0 : i32
    %13 = arith.cmpi eq, %arg1, %c0_i32_5 : i32
    %14 = arith.extui %13 : i1 to i32
    %c0_i32_6 = arith.constant 0 : i32
    %15 = arith.cmpi ne, %14, %c0_i32_6 : i32
    scf.if %15 {
      %c0 = arith.constant 0 : index
      %c0_7 = arith.constant 0 : index
      %16 = vector.load %arg5[%c0, %c0_7] : memref<8x128xf32, #tpu.memory_space<vmem>>, vector<8x128xf32>
      %cst = arith.constant 3.33333337E-5 : f32
      %17 = vector.broadcast %cst : f32 to vector<8x128xf32>
      %18 = arith.mulf %17, %16 : vector<8x128xf32>
      %c0_8 = arith.constant 0 : index
      %c0_9 = arith.constant 0 : index
      %19 = vector.load %arg6[%c0_8, %c0_9] : memref<8x128xf32, #tpu.memory_space<vmem>>, vector<8x128xf32>
      %cst_10 = arith.constant 1.980000e-03 : f32
      %20 = vector.broadcast %cst_10 : f32 to vector<8x128xf32>
      %21 = arith.mulf %20, %19 : vector<8x128xf32>
      %22 = arith.addf %18, %21 : vector<8x128xf32>
      %c0_11 = arith.constant 0 : index
      %c0_12 = arith.constant 0 : index
      %c0_13 = arith.constant 0 : index
      %23 = vector.load %arg4[%c0_11, %c0_12, %c0_13] : memref<1x8x128xf32, #tpu.memory_space<vmem>>, vector<1x8x128xf32>
      %24 = vector.shape_cast %23 : vector<1x8x128xf32> to vector<8x128xf32>
      %25 = vector.shape_cast %22 : vector<8x128xf32> to vector<1x8x128xf32>
      tpu.vector_store %arg4[%c0_11, %c0_12, %c0_13], %25 {strides = array<i32>} : memref<1x8x128xf32, #tpu.memory_space<vmem>>, vector<1x8x128xf32>,
    } else {
    }
    return
  }
  func.func @transform_0(%arg0: i32, %arg1: i32) -> (i32, i32) {
    %c1_i32 = arith.constant 1 : i32
    %0 = arith.muli %arg0, %c1_i32 : i32
    %1 = arith.addi %0, %arg1 : i32
    %c0_i32 = arith.constant 0 : i32
    %2 = arith.minsi %1, %c0_i32 : i32
    %c0_i32_0 = arith.constant 0 : i32
    %c0_i32_1 = arith.constant 0 : i32
    return %2, %c0_i32_0 : i32, i32
  }
  func.func @transform_1(%arg0: i32, %arg1: i32) -> (i32, i32) {
    %c1_i32 = arith.constant 1 : i32
    %0 = arith.muli %arg0, %c1_i32 : i32
    %1 = arith.addi %0, %arg1 : i32
    %c1_i32_0 = arith.constant 1 : i32
    %2 = arith.subi %1, %c1_i32_0 : i32
    %c0_i32 = arith.constant 0 : i32
    %c0_i32_1 = arith.constant 0 : i32
    %3 = arith.maxsi %c0_i32, %2 : i32
    %4 = arith.minsi %c0_i32_1, %3 : i32
    %c0_i32_2 = arith.constant 0 : i32
    %c0_i32_3 = arith.constant 0 : i32
    return %4, %c0_i32_2 : i32, i32
  }
  func.func @transform_2(%arg0: i32, %arg1: i32) -> (i32, i32, i32) {
    %c0_i32 = arith.constant 0 : i32
    %c0_i32_0 = arith.constant 0 : i32
    %c0_i32_1 = arith.constant 0 : i32
    return %arg0, %c0_i32, %c0_i32_0 : i32, i32, i32
  }
}

</mosaic_0001>

<llo_original>
// kernel: tpu_custom_call.1
$region0: #{tpu_custom_call.1}
  #allocation0 [shape = 'u32[]', space=smem, size = 0x4, offset = 0x4, fixed_abs, tag = 'smem constant byte address 0x4 - core index']
  #allocation1 [shape = 'u32[144,128]{1,0:T(1,128)}', space=vmem, size = 0x12000, scoped, tag = 'internal scratch']
  #allocation2 [shape = 'f32[8,128]{1,0:T(8,128)}', space=vmem, size = 0x1000, scoped, tag = 'scratch operand']
  #allocation3 [shape = 'f32[8,128]{1,0:T(8,128)}', space=vmem, size = 0x1000, scoped, tag = 'scratch operand']
  %s0 = inlined_call_operand.hbm [shape: f32[8,128], index: 0, kind: input, shape index: {}]
  %s1 = inlined_call_operand.hbm [shape: f32[8,128], index: 1, kind: input, shape index: {}]
  %s2 = inlined_call_operand.hbm [shape: f32[2,8,128], index: 2, kind: output, shape index: {}]
  %s3 = sld [smem:[#allocation0]]
  $region65: #{tpu_custom_call.1} parent=0
    _
  %s5 = ssub.s32 1, %s3
  %s6 = scalar_select 0, %s5, %s3
  $region1: #{tpu_custom_call.1} parent=0
    #allocation4 [shape = 'u8[8192]{0}', space=vmem, size = 0x2000, scoped, tag = 'input window, operand 0']
    #allocation5 [shape = 's32[2]{0}', space=sflag, size = 0x8, scoped, tag = 'scoped memory for tpu_custom_call.1']
    #allocation6 [shape = 's32[2]{0}', space=sflag, size = 0x8, scoped, tag = 'scoped memory for tpu_custom_call.1']
    #allocation7 [shape = 'u8[8192]{0}', space=vmem, size = 0x2000, scoped, tag = 'input window, operand 1']
    #allocation8 [shape = 's32[2]{0}', space=sflag, size = 0x8, scoped, tag = 'scoped memory for tpu_custom_call.1']
    #allocation9 [shape = 'u8[8192]{0}', space=vmem, size = 0x2000, scoped, tag = 'output window, operand 0']
    %7 = vsyncpa [#allocation5], 0
    %s8 = scalar_lea.sflag [#allocation5], 1
    %9 = vsyncpa %s8, 0
    %10 = vsyncpa [#allocation8], 0
    %s11 = scalar_lea.sflag [#allocation8], 1
    %12 = vsyncpa %s11, 0
    %13 = vsyncpa [#allocation6], 0
    %s14 = scalar_lea.sflag [#allocation6], 1
    %15 = vsyncpa %s14, 0
    loop: start=0, step=1, limit=4
    $region2: #{tpu_custom_call.1} parent=1 // loop_pre_header
      _
    $region3: #{tpu_custom_call.1} parent=1 // loop_header
      %s17 = sphi 0, %s21
      %p18 = scmp.ge.s32.totalorder %s17, 4
      %s24 = sphi 0, %s36
      %s25 = sphi 0, %s32
      %s26 = sphi 0, %s24
      %s27 = sphi 0, %s25
      %s28 = sphi 0, %s26
      %s29 = sphi 0, %s27
      %s45 = sphi 0, %s47
      %s48 = sphi 0, %s45
      %s49 = sphi 0, %s48
      %s65 = sphi 0, %s49
      %s83 = sphi 0, %s85
      %s86 = sphi 0, %s83
      %s87 = sphi 0, %s86
      %s103 = sphi 0, %s87
      %s109 = sphi 0, %s111
      %s112 = sphi 0, %s109
      %s113 = sphi 0, %s112
      %s129 = sphi 0, %s113
    $region4: #{tpu_custom_call.1} parent=1 // loop_header_branch
      %20 = sbr.rel (%p18) target = $region8
    $region5: #{tpu_custom_call.1} parent=1 // loop_body
      %s22 = ssub.s32 %s17, 1
      %s23 = ssub.s32 %s17, 2
      %s30 = sadd.s32 1, %s25
      %p31 = scmp.ge.s32.totalorder %s30, 1
      %s32 = scalar_select %p31, 0, %s30
      %s33 = sadd.s32 1, %s24
      %s34 = scalar_select %p31, %s33, %s24
      %p35 = scmp.ge.s32.totalorder %s34, 2
      %s36 = scalar_select %p35, 0, %s34
      %s37 = sadd.s32 %s24, %s25
      %p38 = scmp.lt.s32.totalorder %s37, 0
      %s39 = scalar_select %p38, %s37, 0
      %s40 = sadd.s32 %s36, %s32
      %p41 = scmp.lt.s32.totalorder %s40, 0
      %s42 = scalar_select %p41, %s40, 0
      %s43 = ssub.s32 %s39, %s42
      %p44 = scmp.eq.s32.totalorder %s43, 0
      %s46 = sadd.s32 %s45, 1
      %s47 = scalar_select %p44, %s45, %s46
      %p50 = pneg %p44
      %p51 = scmp.eq.s32.totalorder %s17, 1
      %p52 = por %p50, %p51
      %p53 = scmp.ne.s32.totalorder %s45, %s48
      %p54 = scmp.eq.s32.totalorder %s17, 0
      %p55 = por %p53, %p54
      %p56 = scmp.ne.s32.totalorder %s45, %s48
      %p57 = scmp.eq.s32.totalorder %s22, 1
      %p58 = por %p56, %p57
      %p59 = scmp.ne.s32.totalorder %s48, %s49
      %p60 = scmp.eq.s32.totalorder %s22, 0
      %p61 = por %p59, %p60
      %p62 = scmp.ne.s32.totalorder %s48, %s49
      %p63 = scmp.eq.s32.totalorder %s23, 1
      %p64 = por %p62, %p63
      %p66 = scmp.ne.s32.totalorder %s49, %s65
      %p67 = scmp.eq.s32.totalorder %s23, 0
      %p68 = por %p66, %p67
      %s69 = sadd.s32 %s24, %s25
      %s70 = ssub.s32 %s69, 1
      %p71 = scmp.gt.s32.totalorder %s70, 0
      %s72 = scalar_select %p71, %s70, 0
      %p73 = scmp.lt.s32.totalorder %s72, 0
      %s74 = scalar_select %p73, %s72, 0
      %s75 = sadd.s32 %s36, %s32
      %s76 = ssub.s32 %s75, 1
      %p77 = scmp.gt.s32.totalorder %s76, 0
      %s78 = scalar_select %p77, %s76, 0
      %p79 = scmp.lt.s32.totalorder %s78, 0
      %s80 = scalar_select %p79, %s78, 0
      %s81 = ssub.s32 %s74, %s80
      %p82 = scmp.eq.s32.totalorder %s81, 0
      %s84 = sadd.s32 %s83, 1
      %s85 = scalar_select %p82, %s83, %s84
      %p88 = pneg %p82
      %p89 = scmp.eq.s32.totalorder %s17, 1
      %p90 = por %p88, %p89
      %p91 = scmp.ne.s32.totalorder %s83, %s86
      %p92 = scmp.eq.s32.totalorder %s17, 0
      %p93 = por %p91, %p92
      %p94 = scmp.ne.s32.totalorder %s83, %s86
      %p95 = scmp.eq.s32.totalorder %s22, 1
      %p96 = por %p94, %p95
      %p97 = scmp.ne.s32.totalorder %s86, %s87
      %p98 = scmp.eq.s32.totalorder %s22, 0
      %p99 = por %p97, %p98
      %p100 = scmp.ne.s32.totalorder %s86, %s87
      %p101 = scmp.eq.s32.totalorder %s23, 1
      %p102 = por %p100, %p101
      %p104 = scmp.ne.s32.totalorder %s87, %s103
      %p105 = scmp.eq.s32.totalorder %s23, 0
      %p106 = por %p104, %p105
      %s107 = ssub.s32 %s24, %s36
      %p108 = scmp.eq.s32.totalorder %s107, 0
      %s110 = sadd.s32 %s109, 1
      %s111 = scalar_select %p108, %s109, %s110
      %p114 = pneg %p108
      %p115 = scmp.eq.s32.totalorder %s17, 1
      %p116 = por %p114, %p115
      %p117 = scmp.ne.s32.totalorder %s109, %s112
      %p118 = scmp.eq.s32.totalorder %s17, 0
      %p119 = por %p117, %p118
      %p120 = scmp.ne.s32.totalorder %s109, %s112
      %p121 = scmp.eq.s32.totalorder %s22, 1
      %p122 = por %p120, %p121
      %p123 = scmp.ne.s32.totalorder %s112, %s113
      %p124 = scmp.eq.s32.totalorder %s22, 0
      %p125 = por %p123, %p124
      %p126 = scmp.ne.s32.totalorder %s112, %s113
      %p127 = scmp.eq.s32.totalorder %s23, 1
      %p128 = por %p126, %p127
      %p130 = scmp.ne.s32.totalorder %s113, %s129
      %p131 = scmp.eq.s32.totalorder %s23, 0
      %p132 = por %p130, %p131
      %p133 = scmp.le.s32.totalorder 1, %s17
      %p134 = scmp.lt.s32.totalorder %s17, 3
      %p135 = pnand %p133, %p134
      %p136 = pneg %p135
      // Predicated region
      $region9: #{tpu_custom_call.1} parent=5 // pred_check
        _
      $region10: #{tpu_custom_call.1} parent=5 // pred_check_branch
        %138 = sbr.rel (%p135) target = $region12
      $region11: #{tpu_custom_call.1} parent=5 // pred_region
        %s139 = ssub.s32 %s17, 1
      $region12: #{tpu_custom_call.1} parent=5 // pred_fallthru
        _
      %p140 = scmp.lt.s32.totalorder %s17, 2
      // Predicated region
      $region13: #{tpu_custom_call.1} parent=5 // pred_check
        %p141 = pneg %p140
      $region14: #{tpu_custom_call.1} parent=5 // pred_check_branch
        %143 = sbr.rel (%p141) target = $region16
      $region15: #{tpu_custom_call.1} parent=5 // pred_region
        // Predicated region
        $region17: #{tpu_custom_call.1} parent=15 // pred_check
          %p144 = pneg %p55
        $region18: #{tpu_custom_call.1} parent=15 // pred_check_branch
          %146 = sbr.rel (%p144) target = $region20
        $region19: #{tpu_custom_call.1} parent=15 // pred_region
          %s147 = sand.u32 %s45, 1
          %s148 = scalar_lea.sflag [#allocation5], %s147
          %s149 = sand.u32 %s45, 1
          %s150 = smul.addr %s149, 8
          %s151 = scalar_lea.vmem [#allocation4], %s150
          %s152 = sadd.s32 %s24, %s25
          %p153 = scmp.lt.s32.totalorder %s152, 0
          %s154 = scalar_select %p153, %s152, 0
          %s156 = ssub.s32 128, 128
          %157 = vsyncadd %s148, %s156
          %s158 = smul.addr %s154, 128
          %s159 = scalar_lea.hbm %s0, %s158
          %s161 = sshll.u32 %s151, 4
          %s162 = int_to_ptr.vmem [resolvable:$true] %s161
          %164 = dma.hbm_to_vmem [thread:$0]  %s159, 128, %s162, %s148
        $region20: #{tpu_custom_call.1} parent=15 // pred_fallthru
          _
        // Predicated region
        $region21: #{tpu_custom_call.1} parent=15 // pred_check
          %p165 = pneg %p93
        $region22: #{tpu_custom_call.1} parent=15 // pred_check_branch
          %167 = sbr.rel (%p165) target = $region24
        $region23: #{tpu_custom_call.1} parent=15 // pred_region
          %s168 = sand.u32 %s83, 1
          %s169 = scalar_lea.sflag [#allocation8], %s168
          %s170 = sand.u32 %s83, 1
          %s171 = smul.addr %s170, 8
          %s172 = scalar_lea.vmem [#allocation7], %s171
          %s173 = sadd.s32 %s24, %s25
          %s174 = ssub.s32 %s173, 1
          %p175 = scmp.gt.s32.totalorder %s174, 0
          %s176 = scalar_select %p175, %s174, 0
          %p177 = scmp.lt.s32.totalorder %s176, 0
          %s178 = scalar_select %p177, %s176, 0
          %s180 = ssub.s32 128, 128
          %181 = vsyncadd %s169, %s180
          %s182 = smul.addr %s178, 128
          %s183 = scalar_lea.hbm %s1, %s182
          %s185 = sshll.u32 %s172, 4
          %s186 = int_to_ptr.vmem [resolvable:$true] %s185
          %188 = dma.hbm_to_vmem [thread:$0]  %s183, 128, %s186, %s169
        $region24: #{tpu_custom_call.1} parent=15 // pred_fallthru
          _
      $region16: #{tpu_custom_call.1} parent=5 // pred_fallthru
        _
      %p189 = scmp.le.s32.totalorder 1, %s17
      %p190 = scmp.lt.s32.totalorder %s17, 3
      %p191 = pnand %p189, %p190
      %p192 = pneg %p191
      // Predicated region
      $region25: #{tpu_custom_call.1} parent=5 // pred_check
        _
      $region26: #{tpu_custom_call.1} parent=5 // pred_check_branch
        %194 = sbr.rel (%p191) target = $region28
      $region27: #{tpu_custom_call.1} parent=5 // pred_region
        %s195 = ssub.s32 %s17, 1
        %s196 = sand.u32 %s48, 1
        %s197 = scalar_lea.sflag [#allocation5], %s196
        %s198 = sand.u32 %s48, 1
        %s199 = smul.addr %s198, 8
        %s200 = scalar_lea.vmem [#allocation4], %s199
        // Predicated region
        $region29: #{tpu_custom_call.1} parent=27 // pred_check
          %p201 = pneg %p61
        $region30: #{tpu_custom_call.1} parent=27 // pred_check_branch
          %203 = sbr.rel (%p201) target = $region32
        $region31: #{tpu_custom_call.1} parent=27 // pred_region
          %204 = dma.done %s197, 128
        $region32: #{tpu_custom_call.1} parent=27 // pred_fallthru
          _
        %s205 = sand.u32 %s86, 1
        %s206 = scalar_lea.sflag [#allocation8], %s205
        %s207 = sand.u32 %s86, 1
        %s208 = smul.addr %s207, 8
        %s209 = scalar_lea.vmem [#allocation7], %s208
        // Predicated region
        $region33: #{tpu_custom_call.1} parent=27 // pred_check
          %p210 = pneg %p99
        $region34: #{tpu_custom_call.1} parent=27 // pred_check_branch
          %212 = sbr.rel (%p210) target = $region36
        $region35: #{tpu_custom_call.1} parent=27 // pred_region
          %213 = dma.done %s206, 128
        $region36: #{tpu_custom_call.1} parent=27 // pred_fallthru
          _
        %s214 = sand.u32 %s48, 1
        %s215 = scalar_lea.sflag [#allocation5], %s214
        %s216 = sand.u32 %s48, 1
        %s217 = smul.addr %s216, 8
        %s218 = scalar_lea.vmem [#allocation4], %s217
        %p219 = pneg %p61
        %p220 = pneg %p58
        %s221 = sand.u32 %s86, 1
        %s222 = scalar_lea.sflag [#allocation8], %s221
        %s223 = sand.u32 %s86, 1
        %s224 = smul.addr %s223, 8
        %s225 = scalar_lea.vmem [#allocation7], %s224
        %p226 = pneg %p99
        %p227 = pneg %p96
        %p228 = pneg %p125
        %p229 = pneg %p122
        %s230 = sand.u32 %s112, 1
        %s231 = scalar_lea.sflag [#allocation6], %s230
        %s232 = sand.u32 %s112, 1
        %s233 = smul.addr %s232, 8
        %s234 = scalar_lea.vmem [#allocation9], %s233
        %s235 = sadd.s32 %s26, %s27
        %p236 = scmp.lt.s32.totalorder %s235, 0
        %s237 = scalar_select %p236, %s235, 0
        %s238 = sadd.s32 %s26, %s27
        %s239 = ssub.s32 %s238, 1
        %p240 = scmp.gt.s32.totalorder %s239, 0
        %s241 = scalar_select %p240, %s239, 0
        %p242 = scmp.lt.s32.totalorder %s241, 0
        %s243 = scalar_select %p242, %s241, 0
        %s244 = sadd.s32 %s26, %s27
        %p245 = scmp.eq.s32.totalorder %s27, 0
        // Predicated region
        $region37: #{tpu_custom_call.1} parent=27 // pred_check
          %p246 = pneg %p245
        $region38: #{tpu_custom_call.1} parent=27 // pred_check_branch
          %248 = sbr.rel (%p246) target = $region40
        $region39: #{tpu_custom_call.1} parent=27 // pred_region
          %249 = vst [vmem:[#allocation2] sm:$0xff] 0.0
          %250 = vst [vmem:[#allocation3] sm:$0xff] 0.0
        $region40: #{tpu_custom_call.1} parent=27 // pred_fallthru
          _
        %p251 = scmp.lt.s32.totalorder %s244, 1
        // Predicated region
        $region41: #{tpu_custom_call.1} parent=27 // pred_check
          %p252 = pneg %p251
        $region42: #{tpu_custom_call.1} parent=27 // pred_check_branch
          %254 = sbr.rel (%p252) target = $region44
        $region43: #{tpu_custom_call.1} parent=27 // pred_region
          %v255 = vld [vmem:[%s200] sm:$0xff]
          %v256 = vsub.f32 4.59512, %v255
          %v257 = vld [vmem:[#allocation2] sm:$0xff]
          %v258 = vmax.f32 %v256, 0.0
          %v259 = vand.u32 2147483647, %v256
          %v260 = vsub.f32 0.0, %v259
          %v261 = vmul.f32 %v260, 1.442695
          %v262 = vpow.pop %v261
          %v263 = vadd.f32 %v262, 1.0
          %v264 = vlog2.pop %v263
          %v265 = vmul.f32 %v264, 0.6931472
          %v266 = vmul.f32 -0.5, %v262
          %v267 = vadd.f32 %v266, 1.0
          %v268 = vmul.f32 %v267, %v262
          %v269 = vand.u32 2147483647, %v262
          %vm270 = vcmp.lt.f32.partialorder %v269, 0.0004427343
          %v271 = vsel %vm270, %v268, %v265
          %v272 = vadd.f32 %v258, %v271
          %v273 = vadd.f32 %v272, 0.0
          %v274 = vadd.f32 %v257, %v273
          %275 = vst [vmem:[#allocation2] sm:$0xff] %v274
        $region44: #{tpu_custom_call.1} parent=27 // pred_fallthru
          _
        %p276 = scmp.ge.s32.totalorder %s244, 1
        %p277 = scmp.lt.s32.totalorder %s244, 2
        %p278 = pnand %p276, %p277
        %p279 = pneg %p278
        // Predicated region
        $region45: #{tpu_custom_call.1} parent=27 // pred_check
          _
        $region46: #{tpu_custom_call.1} parent=27 // pred_check_branch
          %281 = sbr.rel (%p278) target = $region48
        $region47: #{tpu_custom_call.1} parent=27 // pred_region
          %v282 = vld [vmem:[%s209] sm:$0xff]
          %v283 = vadd.f32 %v282, -4.59512
          %v284 = vld [vmem:[#allocation3] sm:$0xff]
          %v285 = vmax.f32 %v283, 0.0
          %v286 = vand.u32 2147483647, %v283
          %v287 = vsub.f32 0.0, %v286
          %v288 = vmul.f32 %v287, 1.442695
          %v289 = vpow.pop %v288
          %v290 = vadd.f32 %v289, 1.0
          %v291 = vlog2.pop %v290
          %v292 = vmul.f32 %v291, 0.6931472
          %v293 = vmul.f32 -0.5, %v289
          %v294 = vadd.f32 %v293, 1.0
          %v295 = vmul.f32 %v294, %v289
          %v296 = vand.u32 2147483647, %v289
          %vm297 = vcmp.lt.f32.partialorder %v296, 0.0004427343
          %v298 = vsel %vm297, %v295, %v292
          %v299 = vadd.f32 %v285, %v298
          %v300 = vadd.f32 %v299, 0.0
          %v301 = vadd.f32 %v284, %v300
          %302 = vst [vmem:[#allocation3] sm:$0xff] %v301
        $region48: #{tpu_custom_call.1} parent=27 // pred_fallthru
          _
        // Predicated region
        $region49: #{tpu_custom_call.1} parent=27 // pred_check
          %p303 = pneg %p245
        $region50: #{tpu_custom_call.1} parent=27 // pred_check_branch
          %305 = sbr.rel (%p303) target = $region52
        $region51: #{tpu_custom_call.1} parent=27 // pred_region
          %v306 = vld [vmem:[#allocation2] sm:$0xff]
          %v307 = vmul.f32 %v306, 3.3333334e-05
          %v308 = vld [vmem:[#allocation3] sm:$0xff]
          %v309 = vmul.f32 %v308, 0.00198
          %v310 = vadd.f32 %v307, %v309
          %311 = vst [vmem:[%s234] sm:$0xff] %v310
        $region52: #{tpu_custom_call.1} parent=27 // pred_fallthru
          _
        %s312 = sand.u32 %s112, 1
        %s313 = scalar_lea.sflag [#allocation6], %s312
        %s314 = sand.u32 %s112, 1
        %s315 = smul.addr %s314, 8
        %s316 = scalar_lea.vmem [#allocation9], %s315
        // Predicated region
        $region53: #{tpu_custom_call.1} parent=27 // pred_check
          %p317 = pneg %p122
        $region54: #{tpu_custom_call.1} parent=27 // pred_check_branch
          %319 = sbr.rel (%p317) target = $region56
        $region55: #{tpu_custom_call.1} parent=27 // pred_region
          %s321 = ssub.s32 128, 128
          %322 = vsyncadd %s313, %s321
          %s323 = smul.addr %s26, 128
          %s324 = scalar_lea.hbm %s2, %s323
          %s326 = sshll.u32 %s316, 4
          %s327 = int_to_ptr.vmem [resolvable:$true] %s326
          %329 = dma.vmem_to_hbm [thread:$0]  %s327, 128, %s324, %s313
        $region56: #{tpu_custom_call.1} parent=27 // pred_fallthru
          _
      $region28: #{tpu_custom_call.1} parent=5 // pred_fallthru
        _
      %p330 = scmp.le.s32.totalorder 2, %s17
      // Predicated region
      $region57: #{tpu_custom_call.1} parent=5 // pred_check
        %p331 = pneg %p330
      $region58: #{tpu_custom_call.1} parent=5 // pred_check_branch
        %333 = sbr.rel (%p331) target = $region60
      $region59: #{tpu_custom_call.1} parent=5 // pred_region
        %s334 = ssub.s32 %s17, 2
        // Predicated region
        $region61: #{tpu_custom_call.1} parent=59 // pred_check
          %p335 = pneg %p128
        $region62: #{tpu_custom_call.1} parent=59 // pred_check_branch
          %337 = sbr.rel (%p335) target = $region64
        $region63: #{tpu_custom_call.1} parent=59 // pred_region
          %s338 = sand.u32 %s113, 1
          %s339 = scalar_lea.sflag [#allocation6], %s338
          %s340 = sand.u32 %s113, 1
          %s341 = smul.addr %s340, 8
          %s342 = scalar_lea.vmem [#allocation9], %s341
          %343 = dma.done %s339, 128
        $region64: #{tpu_custom_call.1} parent=59 // pred_fallthru
          _
      $region60: #{tpu_custom_call.1} parent=5 // pred_fallthru
        _
    $region6: #{tpu_custom_call.1} parent=1 // loop_footer
      %s21 = sadd.s32 1, %s17
    $region7: #{tpu_custom_call.1} parent=1 // loop_footer_branch
      %16 = sbr.rel target = $region3
    $region8: #{tpu_custom_call.1} parent=1 // loop_exit
      _
    %344 = vsyncpa [#allocation5], 1
    %s345 = scalar_lea.sflag [#allocation5], 1
    %346 = vsyncpa %s345, 1
    %347 = vsyncpa [#allocation8], 1
    %s348 = scalar_lea.sflag [#allocation8], 1
    %349 = vsyncpa %s348, 1
    %350 = vsyncpa [#allocation6], 1
    %s351 = scalar_lea.sflag [#allocation6], 1
    %352 = vsyncpa %s351, 1

</llo_original>
